<compile_context>
chip_gen: v6e
topology: v6e:2x2x1
jax: 0.10.0
libtpu: 0.0.40
codegen_flags: <defaults>
</compile_context>

<pallas_src>
import jax
import jax.numpy as jnp
from jax.experimental import pallas as pl
from jax.experimental.pallas import tpu as pltpu

HIDDEN_SIZE = 64
LANE = 128          # padded output width (lane-dense store)


def _round_up(n, m):
    return ((n + m - 1) // m) * m


# ---------------------------------------------------------------------------
# Kernel: one batch tile through the whole 4-layer MLP, entirely in VMEM.
# ---------------------------------------------------------------------------
def _critic_kernel(x_ref,
                   w1_ref, b1_ref,
                   w2_ref, b2_ref,
                   w3_ref, b3_ref,
                   wq_ref, bq_ref,
                   q_ref):
    x = x_ref[...]                                                    # (TB, D_in) bf16

    h = jnp.dot(x, w1_ref[...], preferred_element_type=jnp.float32) + b1_ref[...]
    h = jnp.maximum(h, 0.0).astype(jnp.bfloat16)                      # relu(fc1)

    h = jnp.dot(h, w2_ref[...], preferred_element_type=jnp.float32) + b2_ref[...]
    h = jnp.maximum(h, 0.0).astype(jnp.bfloat16)                      # relu(fc2)

    h = jnp.dot(h, w3_ref[...], preferred_element_type=jnp.float32) + b3_ref[...]
    h = jnp.maximum(h, 0.0).astype(jnp.bfloat16)                      # relu(fc3)

    q = jnp.dot(h, wq_ref[...], preferred_element_type=jnp.float32) + bq_ref[...]
    q_ref[...] = q                                                    # (TB, 128), col 0 is q


# ---------------------------------------------------------------------------
# Wrapper: grid over the batch, weights VMEM-resident across tiles.
# ---------------------------------------------------------------------------
def critic_pallas(x_bf16, params, *, block_b=256):
    B, d_in = x_bf16.shape
    hidden = params["w2"].shape[0]

    tb = min(block_b, _round_up(B, 8))          # batch tile (multiple of 8)
    b_pad = _round_up(B, tb)
    if b_pad != B:
        x_bf16 = jnp.pad(x_bf16, ((0, b_pad - B), (0, 0)))
    grid = (b_pad // tb,)

    def _full(arr):
        # Whole-array block, constant index map -> stays resident in VMEM across tiles.
        return pl.BlockSpec(arr.shape, lambda i: (0, 0))

    in_specs = [
        pl.BlockSpec((tb, d_in), lambda i: (i, 0)),   # x tile
        _full(params["w1"]), _full(params["b1"]),
        _full(params["w2"]), _full(params["b2"]),
        _full(params["w3"]), _full(params["b3"]),
        _full(params["wq"]), _full(params["bq"]),
    ]
    out_spec = pl.BlockSpec((tb, LANE), lambda i: (i, 0))

    flops = 2 * b_pad * (d_in * hidden + hidden * hidden * 2 + hidden * LANE)
    bytes_accessed = (
        x_bf16.size * x_bf16.dtype.itemsize
        + sum(int(p.size) * p.dtype.itemsize for p in params.values())
        + b_pad * LANE * 4
    )

    q_full = pl.pallas_call(
        _critic_kernel,
        out_shape=jax.ShapeDtypeStruct((b_pad, LANE), jnp.float32),
        grid=grid,
        in_specs=in_specs,
        out_specs=out_spec,
        compiler_params=pltpu.CompilerParams(
            dimension_semantics=("parallel",)),          # shards tiles across TCs on v7x
        cost_estimate=pl.CostEstimate(
            flops=int(flops), transcendentals=0, bytes_accessed=int(bytes_accessed)),
    )(x_bf16,
      params["w1"], params["b1"],
      params["w2"], params["b2"],
      params["w3"], params["b3"],
      params["wq"], params["bq"])

    return q_full[:B, :1]


# ---------------------------------------------------------------------------
# Parameter construction (PyTorch nn.Linear-style init) + one-time prep.
# ---------------------------------------------------------------------------
def init_params(key, input_dim, hidden=HIDDEN_SIZE):
    def linear(k, fan_in, fan_out):
        kw, kb = jax.random.split(k)
        bound = 1.0 / jnp.sqrt(fan_in)
        w = jax.random.uniform(kw, (fan_in, fan_out), jnp.float32, -bound, bound)
        b = jax.random.uniform(kb, (1, fan_out), jnp.float32, -bound, bound)
        return w, b

    k1, k2, k3, k4 = jax.random.split(key, 4)
    w1, b1 = linear(k1, input_dim, hidden)
    w2, b2 = linear(k2, hidden, hidden)
    w3, b3 = linear(k3, hidden, hidden)
    wq, bq = linear(k4, hidden, 1)
    return {"w1": w1, "b1": b1, "w2": w2, "b2": b2,
            "w3": w3, "b3": b3, "wq": wq, "bq": bq}


def prepare_params(raw, obs_dims, act_dims, max_action):
    """One-time transform for the kernel:
       - fold 1/max_action into the action rows of w1 (kills runtime divide),
       - cast weights to bf16 (MXU-native), keep biases f32 (added post-accumulation),
       - zero-pad the q head to 128 output lanes for a lane-dense store."""
    obs_dim = sum(obs_dims)
    act_dim = sum(act_dims)
    scale = jnp.concatenate(
        [jnp.ones((obs_dim, 1), jnp.float32),
         jnp.full((act_dim, 1), 1.0 / max_action, jnp.float32)], axis=0)
    w1 = raw["w1"] * scale

    wq = jnp.zeros((HIDDEN_SIZE, LANE), jnp.float32).at[:, :1].set(raw["wq"])
    bq = jnp.zeros((1, LANE), jnp.float32).at[:, :1].set(raw["bq"])

    return {"w1": w1.astype(jnp.bfloat16), "b1": raw["b1"],
            "w2": raw["w2"].astype(jnp.bfloat16), "b2": raw["b2"],
            "w3": raw["w3"].astype(jnp.bfloat16), "b3": raw["b3"],
            "wq": wq.astype(jnp.bfloat16), "bq": bq}


def critic_forward(state_list, action_list, prepared_params, *, block_b=256):
    """Mirrors Critic.forward.  Action scaling is pre-folded into w1, so the wrapper
    only does a single concat and casts to bf16 for the MXU."""
    x = jnp.concatenate(list(state_list) + list(action_list), axis=1).astype(jnp.bfloat16)
    return critic_pallas(x, prepared_params, block_b=block_b)


# ---------------------------------------------------------------------------
# References (pure JAX) for correctness checks.
# ---------------------------------------------------------------------------
def _reference_f32(state_list, action_list, raw, max_action):
    state = jnp.concatenate(state_list, axis=1)
    action = jnp.concatenate([a / max_action for a in action_list], axis=1)
    x = jnp.concatenate([state, action], axis=1).astype(jnp.float32)
    h = jnp.maximum(x @ raw["w1"] + raw["b1"], 0.0)
    h = jnp.maximum(h @ raw["w2"] + raw["b2"], 0.0)
    h = jnp.maximum(h @ raw["w3"] + raw["b3"], 0.0)
    return h @ raw["wq"] + raw["bq"]


def _reference_bf16(state_list, action_list, prepared):
    x = jnp.concatenate(list(state_list) + list(action_list), axis=1).astype(jnp.bfloat16)
    h = jnp.maximum(jnp.dot(x, prepared["w1"], preferred_element_type=jnp.float32)
                    + prepared["b1"], 0.0).astype(jnp.bfloat16)
    h = jnp.maximum(jnp.dot(h, prepared["w2"], preferred_element_type=jnp.float32)
                    + prepared["b2"], 0.0).astype(jnp.bfloat16)
    h = jnp.maximum(jnp.dot(h, prepared["w3"], preferred_element_type=jnp.float32)
                    + prepared["b3"], 0.0).astype(jnp.bfloat16)
    q = jnp.dot(h, prepared["wq"], preferred_element_type=jnp.float32) + prepared["bq"]
    return q[:, :1]


if __name__ == "__main__":
    # Small MADDPG-like setup: 3 agents, obs dims [6, 6, 6], action dims [5, 5, 5]
    n_agents = 3
    obs_shape = [6, 6, 6]
    action_shape = [5, 5, 5]
    high_action = 2.0                      # != 1 so the folded scaling is exercised
    batch = 8
    input_dim = sum(obs_shape) + sum(action_shape)   # 33

    key = jax.random.PRNGKey(0)
    kp, ks, ka = jax.random.split(key, 3)
    raw_params = init_params(kp, input_dim)
    params = prepare_params(raw_params, obs_shape, action_shape, high_action)

    skeys = jax.random.split(ks, n_agents)
    akeys = jax.random.split(ka, n_agents)
    state_list = [jax.random.normal(skeys[i], (batch, obs_shape[i]), jnp.float32)
                  for i in range(n_agents)]
    action_list = [jax.random.normal(akeys[i], (batch, action_shape[i]), jnp.float32)
                   for i in range(n_agents)]

    q = critic_forward(state_list, action_list, params)
    q = jax.block_until_ready(q)
    assert q.shape == (batch, 1)

    # Tight check against the identical bf16/f32-accum math (validates the kernel),
    # loose check against the full-f32 PyTorch-equivalent path (validates semantics).
    q_bf16_ref = _reference_bf16(state_list, action_list, params)
    q_f32_ref = _reference_f32(state_list, action_list, raw_params, high_action)
    assert jnp.allclose(q, q_bf16_ref, atol=1e-3, rtol=1e-3), "mismatch vs bf16 reference"
    assert jnp.allclose(q, q_f32_ref, atol=5e-2, rtol=5e-2), "mismatch vs f32 reference"

    print("KERNEL_OK")
</pallas_src>

<mosaic_0001>
module attributes {stable_mosaic.version = 11 : i64} {
  func.func @_critic_kernel(%arg0: i32, %arg1: memref<8x33xbf16, #tpu.memory_space<vmem>>, %arg2: memref<33x64xbf16, #tpu.memory_space<vmem>>, %arg3: memref<1x64xf32, #tpu.memory_space<vmem>>, %arg4: memref<64x64xbf16, #tpu.memory_space<vmem>>, %arg5: memref<1x64xf32, #tpu.memory_space<vmem>>, %arg6: memref<64x64xbf16, #tpu.memory_space<vmem>>, %arg7: memref<1x64xf32, #tpu.memory_space<vmem>>, %arg8: memref<64x128xbf16, #tpu.memory_space<vmem>>, %arg9: memref<1x128xf32, #tpu.memory_space<vmem>>, %arg10: memref<8x128xf32, #tpu.memory_space<vmem>>) attributes {dimension_semantics = [#tpu.dimension_semantics<parallel>], iteration_bounds = array<i64: 1>, scalar_prefetch = 0 : i64, scratch_operands = 0 : i64, tpu.core_type = #tpu.core_type<tc>, window_params = [{transform_indices = @transform_0, window_bounds = array<i64: 8, 33>}, {pipeline_mode = #tpu.pipeline_mode<synchronous>, transform_indices = @transform_1, window_bounds = array<i64: 33, 64>}, {pipeline_mode = #tpu.pipeline_mode<synchronous>, transform_indices = @transform_2, window_bounds = array<i64: 1, 64>}, {pipeline_mode = #tpu.pipeline_mode<synchronous>, transform_indices = @transform_3, window_bounds = array<i64: 64, 64>}, {pipeline_mode = #tpu.pipeline_mode<synchronous>, transform_indices = @transform_4, window_bounds = array<i64: 1, 64>}, {pipeline_mode = #tpu.pipeline_mode<synchronous>, transform_indices = @transform_5, window_bounds = array<i64: 64, 64>}, {pipeline_mode = #tpu.pipeline_mode<synchronous>, transform_indices = @transform_6, window_bounds = array<i64: 1, 64>}, {pipeline_mode = #tpu.pipeline_mode<synchronous>, transform_indices = @transform_7, window_bounds = array<i64: 64, 128>}, {pipeline_mode = #tpu.pipeline_mode<synchronous>, transform_indices = @transform_8, window_bounds = array<i64: 1, 128>}, {transform_indices = @transform_9, window_bounds = array<i64: 8, 128>}]} {
    %c0 = arith.constant 0 : index
    %c0_0 = arith.constant 0 : index
    %0 = vector.load %arg1[%c0, %c0_0] : memref<8x33xbf16, #tpu.memory_space<vmem>>, vector<8x33xbf16>
    %c0_1 = arith.constant 0 : index
    %c0_2 = arith.constant 0 : index
    %1 = vector.load %arg2[%c0_1, %c0_2] : memref<33x64xbf16, #tpu.memory_space<vmem>>, vector<33x64xbf16>
    %cst = arith.constant dense<0.000000e+00> : vector<8x64xf32>
    %2 = tpu.matmul %0, %1, %cst {dimension_numbers = #tpu.dot_dimension_numbers<[1], [0], [0], [1], [0, 0, 1, 1], [], []>} : vector<8x33xbf16>, vector<33x64xbf16>, vector<8x64xf32> -> vector<8x64xf32>
    %c0_3 = arith.constant 0 : index
    %c0_4 = arith.constant 0 : index
    %3 = vector.load %arg3[%c0_3, %c0_4] : memref<1x64xf32, #tpu.memory_space<vmem>>, vector<1x64xf32>
    %4 = vector.broadcast %3 : vector<1x64xf32> to vector<8x64xf32>
    %5 = arith.addf %2, %4 : vector<8x64xf32>
    %cst_5 = arith.constant 0.000000e+00 : f32
    %6 = vector.broadcast %cst_5 : f32 to vector<8x64xf32>
    %7 = arith.maximumf %5, %6 : vector<8x64xf32>
    %8 = arith.truncf %7 : vector<8x64xf32> to vector<8x64xbf16>
    %c0_6 = arith.constant 0 : index
    %c0_7 = arith.constant 0 : index
    %9 = vector.load %arg4[%c0_6, %c0_7] : memref<64x64xbf16, #tpu.memory_space<vmem>>, vector<64x64xbf16>
    %cst_8 = arith.constant dense<0.000000e+00> : vector<8x64xf32>
    %10 = tpu.matmul %8, %9, %cst_8 {dimension_numbers = #tpu.dot_dimension_numbers<[1], [0], [0], [1], [0, 0, 1, 1], [], []>} : vector<8x64xbf16>, vector<64x64xbf16>, vector<8x64xf32> -> vector<8x64xf32>
    %c0_9 = arith.constant 0 : index
    %c0_10 = arith.constant 0 : index
    %11 = vector.load %arg5[%c0_9, %c0_10] : memref<1x64xf32, #tpu.memory_space<vmem>>, vector<1x64xf32>
    %12 = vector.broadcast %11 : vector<1x64xf32> to vector<8x64xf32>
    %13 = arith.addf %10, %12 : vector<8x64xf32>
    %cst_11 = arith.constant 0.000000e+00 : f32
    %14 = vector.broadcast %cst_11 : f32 to vector<8x64xf32>
    %15 = arith.maximumf %13, %14 : vector<8x64xf32>
    %16 = arith.truncf %15 : vector<8x64xf32> to vector<8x64xbf16>
    %c0_12 = arith.constant 0 : index
    %c0_13 = arith.constant 0 : index
    %17 = vector.load %arg6[%c0_12, %c0_13] : memref<64x64xbf16, #tpu.memory_space<vmem>>, vector<64x64xbf16>
    %cst_14 = arith.constant dense<0.000000e+00> : vector<8x64xf32>
    %18 = tpu.matmul %16, %17, %cst_14 {dimension_numbers = #tpu.dot_dimension_numbers<[1], [0], [0], [1], [0, 0, 1, 1], [], []>} : vector<8x64xbf16>, vector<64x64xbf16>, vector<8x64xf32> -> vector<8x64xf32>
    %c0_15 = arith.constant 0 : index
    %c0_16 = arith.constant 0 : index
    %19 = vector.load %arg7[%c0_15, %c0_16] : memref<1x64xf32, #tpu.memory_space<vmem>>, vector<1x64xf32>
    %20 = vector.broadcast %19 : vector<1x64xf32> to vector<8x64xf32>
    %21 = arith.addf %18, %20 : vector<8x64xf32>
    %cst_17 = arith.constant 0.000000e+00 : f32
    %22 = vector.broadcast %cst_17 : f32 to vector<8x64xf32>
    %23 = arith.maximumf %21, %22 : vector<8x64xf32>
    %24 = arith.truncf %23 : vector<8x64xf32> to vector<8x64xbf16>
    %c0_18 = arith.constant 0 : index
    %c0_19 = arith.constant 0 : index
    %25 = vector.load %arg8[%c0_18, %c0_19] : memref<64x128xbf16, #tpu.memory_space<vmem>>, vector<64x128xbf16>
    %cst_20 = arith.constant dense<0.000000e+00> : vector<8x128xf32>
    %26 = tpu.matmul %24, %25, %cst_20 {dimension_numbers = #tpu.dot_dimension_numbers<[1], [0], [0], [1], [0, 0, 1, 1], [], []>} : vector<8x64xbf16>, vector<64x128xbf16>, vector<8x128xf32> -> vector<8x128xf32>
    %c0_21 = arith.constant 0 : index
    %c0_22 = arith.constant 0 : index
    %27 = vector.load %arg9[%c0_21, %c0_22] : memref<1x128xf32, #tpu.memory_space<vmem>>, vector<1x128xf32>
    %28 = vector.broadcast %27 : vector<1x128xf32> to vector<8x128xf32>
    %29 = arith.addf %26, %28 : vector<8x128xf32>
    %c0_23 = arith.constant 0 : index
    %c0_24 = arith.constant 0 : index
    %30 = vector.load %arg10[%c0_23, %c0_24] : memref<8x128xf32, #tpu.memory_space<vmem>>, vector<8x128xf32>
    tpu.vector_store %arg10[%c0_23, %c0_24], %29 {strides = array<i32>} : memref<8x128xf32, #tpu.memory_space<vmem>>, vector<8x128xf32>,
    return
  }
  func.func @transform_0(%arg0: i32) -> (i32, i32) {
    %c0_i32 = arith.constant 0 : i32
    %c0_i32_0 = arith.constant 0 : i32
    return %arg0, %c0_i32 : i32, i32
  }
  func.func @transform_1(%arg0: i32) -> (i32, i32) {
    %c0_i32 = arith.constant 0 : i32
    %c0_i32_0 = arith.constant 0 : i32
    %c0_i32_1 = arith.constant 0 : i32
    return %c0_i32, %c0_i32_0 : i32, i32
  }
  func.func @transform_2(%arg0: i32) -> (i32, i32) {
    %c0_i32 = arith.constant 0 : i32
    %c0_i32_0 = arith.constant 0 : i32
    %c0_i32_1 = arith.constant 0 : i32
    return %c0_i32, %c0_i32_0 : i32, i32
  }
  func.func @transform_3(%arg0: i32) -> (i32, i32) {
    %c0_i32 = arith.constant 0 : i32
    %c0_i32_0 = arith.constant 0 : i32
    %c0_i32_1 = arith.constant 0 : i32
    return %c0_i32, %c0_i32_0 : i32, i32
  }
  func.func @transform_4(%arg0: i32) -> (i32, i32) {
    %c0_i32 = arith.constant 0 : i32
    %c0_i32_0 = arith.constant 0 : i32
    %c0_i32_1 = arith.constant 0 : i32
    return %c0_i32, %c0_i32_0 : i32, i32
  }
  func.func @transform_5(%arg0: i32) -> (i32, i32) {
    %c0_i32 = arith.constant 0 : i32
    %c0_i32_0 = arith.constant 0 : i32
    %c0_i32_1 = arith.constant 0 : i32
    return %c0_i32, %c0_i32_0 : i32, i32
  }
  func.func @transform_6(%arg0: i32) -> (i32, i32) {
    %c0_i32 = arith.constant 0 : i32
    %c0_i32_0 = arith.constant 0 : i32
    %c0_i32_1 = arith.constant 0 : i32
    return %c0_i32, %c0_i32_0 : i32, i32
  }
  func.func @transform_7(%arg0: i32) -> (i32, i32) {
    %c0_i32 = arith.constant 0 : i32
    %c0_i32_0 = arith.constant 0 : i32
    %c0_i32_1 = arith.constant 0 : i32
    return %c0_i32, %c0_i32_0 : i32, i32
  }
  func.func @transform_8(%arg0: i32) -> (i32, i32) {
    %c0_i32 = arith.constant 0 : i32
    %c0_i32_0 = arith.constant 0 : i32
    %c0_i32_1 = arith.constant 0 : i32
    return %c0_i32, %c0_i32_0 : i32, i32
  }
  func.func @transform_9(%arg0: i32) -> (i32, i32) {
    %c0_i32 = arith.constant 0 : i32
    %c0_i32_0 = arith.constant 0 : i32
    return %arg0, %c0_i32 : i32, i32
  }
}

</mosaic_0001>

<llo_original>
// kernel: tpu_custom_call.1
$region0: #{tpu_custom_call.1}
  #allocation0 [shape = 'u32[]', space=smem, size = 0x4, offset = 0x4, fixed_abs, tag = 'smem constant byte address 0x4 - core index']
  #allocation1 [shape = 'u32[144,128]{1,0:T(1,128)}', space=vmem, size = 0x12000, scoped, tag = 'internal scratch']
  %s0 = inlined_call_operand.hbm [shape: bf16[8,33], index: 0, kind: input, shape index: {}]
  %s1 = inlined_call_operand.hbm [shape: bf16[33,64], index: 1, kind: input, shape index: {}]
  %s2 = inlined_call_operand.vmem [shape: f32[1,64], index: 2, kind: input, shape index: {}]
  %s3 = inlined_call_operand.hbm [shape: bf16[64,64], index: 3, kind: input, shape index: {}]
  %s4 = inlined_call_operand.vmem [shape: f32[1,64], index: 4, kind: input, shape index: {}]
  %s5 = inlined_call_operand.hbm [shape: bf16[64,64], index: 5, kind: input, shape index: {}]
  %s6 = inlined_call_operand.vmem [shape: f32[1,64], index: 6, kind: input, shape index: {}]
  %s7 = inlined_call_operand.hbm [shape: bf16[64,128], index: 7, kind: input, shape index: {}]
  %s8 = inlined_call_operand.vmem [shape: f32[1,128], index: 8, kind: input, shape index: {}]
  %s9 = inlined_call_operand.hbm [shape: f32[8,128], index: 9, kind: output, shape index: {}]
  %s10 = sld [smem:[#allocation0]]
  $region66: #{tpu_custom_call.1} parent=0
    _
  %s12 = ssub.s32 1, %s10
  %s13 = scalar_select 0, %s12, %s10
  $region1: #{tpu_custom_call.1} parent=0
    #allocation2 [shape = 'u8[2048]{0}', space=vmem, size = 0x800, scoped, tag = 'input window, operand 0, single buffered']
    #allocation3 [shape = 's32[1]{0}', space=sflag, size = 0x4, scoped, tag = 'scoped memory for tpu_custom_call.1']
    #allocation4 [shape = 's32[1]{0}', space=sflag, size = 0x4, scoped, tag = 'scoped memory for tpu_custom_call.1']
    #allocation5 [shape = 'u8[10240]{0}', space=vmem, size = 0x2800, scoped, tag = 'input window, operand 1, single buffered']
    #allocation6 [shape = 's32[1]{0}', space=sflag, size = 0x4, scoped, tag = 'scoped memory for tpu_custom_call.1']
    #allocation7 [shape = 'u8[16384]{0}', space=vmem, size = 0x4000, scoped, tag = 'input window, operand 3, single buffered']
    #allocation8 [shape = 'u8[16384]{0}', space=vmem, size = 0x4000, scoped, tag = 'input window, operand 5, single buffered']
    #allocation9 [shape = 's32[1]{0}', space=sflag, size = 0x4, scoped, tag = 'scoped memory for tpu_custom_call.1']
    #allocation10 [shape = 'u8[16384]{0}', space=vmem, size = 0x4000, scoped, tag = 'input window, operand 7, single buffered']
    #allocation11 [shape = 'u8[4096]{0}', space=vmem, size = 0x1000, scoped, tag = 'output window, operand 0, single buffered']
    %14 = vsyncpa [#allocation3], 0
    %15 = vsyncpa [#allocation6], 0
    %16 = vsyncpa [#allocation9], 0
    %17 = vsyncpa [#allocation4], 0
    // Predicated region
    $region2: #{tpu_custom_call.1} parent=1 // pred_check
      _
    $region3: #{tpu_custom_call.1} parent=1 // pred_check_branch
      %19 = sbr.rel (0) target = $region5
    $region4: #{tpu_custom_call.1} parent=1 // pred_region
      %s21 = ssub.s32 64, 64
      %22 = vsyncadd [#allocation3], %s21
      %s24 = sshll.u32 [#allocation2], 4
      %s25 = int_to_ptr.vmem [resolvable:$true] %s24
      %27 = dma.hbm_to_vmem [thread:$0]  %s0, 64, %s25, [#allocation3]
    $region5: #{tpu_custom_call.1} parent=1 // pred_fallthru
      _
    // Predicated region
    $region6: #{tpu_custom_call.1} parent=1 // pred_check
      _
    $region7: #{tpu_custom_call.1} parent=1 // pred_check_branch
      %29 = sbr.rel (0) target = $region9
    $region8: #{tpu_custom_call.1} parent=1 // pred_region
      %s31 = ssub.s32 320, 320
      %32 = vsyncadd [#allocation6], %s31
      %s33 = sshll.u32 [#allocation5], 4
      %s34 = int_to_ptr.vmem [resolvable:$true] %s33
      %39 = dma.hbm_to_vmem [thread:$0]  %s1, 320, %s34, [#allocation6], 64, 64, 4
    $region9: #{tpu_custom_call.1} parent=1 // pred_fallthru
      _
    // Predicated region
    $region10: #{tpu_custom_call.1} parent=1 // pred_check
      _
    $region11: #{tpu_custom_call.1} parent=1 // pred_check_branch
      %41 = sbr.rel (0) target = $region13
    $region12: #{tpu_custom_call.1} parent=1 // pred_region
      _
    $region13: #{tpu_custom_call.1} parent=1 // pred_fallthru
      _
    // Predicated region
    $region14: #{tpu_custom_call.1} parent=1 // pred_check
      _
    $region15: #{tpu_custom_call.1} parent=1 // pred_check_branch
      %43 = sbr.rel (0) target = $region17
    $region16: #{tpu_custom_call.1} parent=1 // pred_region
      %s45 = ssub.s32 512, 512
      %46 = vsyncadd [#allocation6], %s45
      %s47 = sshll.u32 [#allocation7], 4
      %s48 = int_to_ptr.vmem [resolvable:$true] %s47
      %53 = dma.hbm_to_vmem [thread:$0]  %s3, 512, %s48, [#allocation6], 64, 64, 4
    $region17: #{tpu_custom_call.1} parent=1 // pred_fallthru
      _
    // Predicated region
    $region18: #{tpu_custom_call.1} parent=1 // pred_check
      _
    $region19: #{tpu_custom_call.1} parent=1 // pred_check_branch
      %55 = sbr.rel (0) target = $region21
    $region20: #{tpu_custom_call.1} parent=1 // pred_region
      _
    $region21: #{tpu_custom_call.1} parent=1 // pred_fallthru
      _
    // Predicated region
    $region22: #{tpu_custom_call.1} parent=1 // pred_check
      _
    $region23: #{tpu_custom_call.1} parent=1 // pred_check_branch
      %57 = sbr.rel (0) target = $region25
    $region24: #{tpu_custom_call.1} parent=1 // pred_region
      %s59 = ssub.s32 512, 512
      %60 = vsyncadd [#allocation9], %s59
      %s61 = sshll.u32 [#allocation8], 4
      %s62 = int_to_ptr.vmem [resolvable:$true] %s61
      %67 = dma.hbm_to_vmem [thread:$0]  %s5, 512, %s62, [#allocation9], 64, 64, 4
    $region25: #{tpu_custom_call.1} parent=1 // pred_fallthru
      _
    // Predicated region
    $region26: #{tpu_custom_call.1} parent=1 // pred_check
      _
    $region27: #{tpu_custom_call.1} parent=1 // pred_check_branch
      %69 = sbr.rel (0) target = $region29
    $region28: #{tpu_custom_call.1} parent=1 // pred_region
      _
    $region29: #{tpu_custom_call.1} parent=1 // pred_fallthru
      _
    // Predicated region
    $region30: #{tpu_custom_call.1} parent=1 // pred_check
      _
    $region31: #{tpu_custom_call.1} parent=1 // pred_check_branch
      %71 = sbr.rel (0) target = $region33
    $region32: #{tpu_custom_call.1} parent=1 // pred_region
      %s73 = ssub.s32 512, 512
      %74 = vsyncadd [#allocation9], %s73
      %s75 = sshll.u32 [#allocation10], 4
      %s76 = int_to_ptr.vmem [resolvable:$true] %s75
      %81 = dma.hbm_to_vmem [thread:$0]  %s7, 512, %s76, [#allocation9], 64, 64, 4
    $region33: #{tpu_custom_call.1} parent=1 // pred_fallthru
      _
    // Predicated region
    $region34: #{tpu_custom_call.1} parent=1 // pred_check
      _
    $region35: #{tpu_custom_call.1} parent=1 // pred_check_branch
      %83 = sbr.rel (0) target = $region37
    $region36: #{tpu_custom_call.1} parent=1 // pred_region
      _
    $region37: #{tpu_custom_call.1} parent=1 // pred_fallthru
      _
    // Predicated region
    $region38: #{tpu_custom_call.1} parent=1 // pred_check
      _
    $region39: #{tpu_custom_call.1} parent=1 // pred_check_branch
      %85 = sbr.rel (0) target = $region41
    $region40: #{tpu_custom_call.1} parent=1 // pred_region
      %86 = dma.done [#allocation3], 64
    $region41: #{tpu_custom_call.1} parent=1 // pred_fallthru
      _
    // Predicated region
    $region42: #{tpu_custom_call.1} parent=1 // pred_check
      _
    $region43: #{tpu_custom_call.1} parent=1 // pred_check_branch
      %88 = sbr.rel (0) target = $region45
    $region44: #{tpu_custom_call.1} parent=1 // pred_region
      %89 = dma.done [#allocation6], 320
    $region45: #{tpu_custom_call.1} parent=1 // pred_fallthru
      _
    // Predicated region
    $region46: #{tpu_custom_call.1} parent=1 // pred_check
      _
    $region47: #{tpu_custom_call.1} parent=1 // pred_check_branch
      %91 = sbr.rel (0) target = $region49
    $region48: #{tpu_custom_call.1} parent=1 // pred_region
      %92 = dma.done [#allocation6], 512
    $region49: #{tpu_custom_call.1} parent=1 // pred_fallthru
      _
    // Predicated region
    $region50: #{tpu_custom_call.1} parent=1 // pred_check
      _
    $region51: #{tpu_custom_call.1} parent=1 // pred_check_branch
      %94 = sbr.rel (0) target = $region53
    $region52: #{tpu_custom_call.1} parent=1 // pred_region
      %95 = dma.done [#allocation9], 512
    $region53: #{tpu_custom_call.1} parent=1 // pred_fallthru
      _
    // Predicated region
    $region54: #{tpu_custom_call.1} parent=1 // pred_check
      _
    $region55: #{tpu_custom_call.1} parent=1 // pred_check_branch
      %97 = sbr.rel (0) target = $region57
    $region56: #{tpu_custom_call.1} parent=1 // pred_region
      %98 = dma.done [#allocation9], 512
    $region57: #{tpu_custom_call.1} parent=1 // pred_fallthru
      _
    %v100 = vld [vmem:[#allocation2] sm:$0xf]
    %v101 = vld [vmem:[#allocation5] sm:$0xf]
    %v102 = vld [vmem:[#allocation5 + $0x4] sm:$0xf]
    %v103 = vld [vmem:[#allocation5 + $0x8] sm:$0xf]
    %v104 = vld [vmem:[#allocation5 + $0xc] sm:$0xf]
    %v105 = vld [vmem:[#allocation5 + $0x10] sm:$0x1]
    %v106 = vld [vmem:[%s2] sm:$0x1]
    %v108 = vlaneseq
    %v109 = vshrl.u32 %v108, 7
    %v110 = vsub.s32 0, %v109
    %v111 = vrot.slane %v106, %v110
    %v118 = vunpack.c.l.b16 %v101
    %v119 = vunpack.c.l.b16 %v102
    %v120 = vunpack.c.l.b16 %v103
    %v121 = vunpack.c.l.b16 %v104
    %v122 = vunpack.c.l.b16 %v105
    %v123 = vpack.c.b16 %v119, %v118
    %v124 = vpack.c.b16 %v121, %v120
    %v125 = vpack.c.b16 %v122, %v122
    %vm128 = vcmask 269312
    %v130 = vsel %vm128, %v100, 0
    %vm132 = vcmask 1040384
    %v133 = vsel 0, 4294967295, 65535
    %v134 = vsel %vm132, %v133, 0
    %v136 = vand.u32 %v125, %v134
    %138 = vmatprep.subr.bf16.mxu0 0
    %139 = vmatpush1.bf16.msra.mxu0 0
    %140 = vmatprep.subr.bf16.mxu0 0
    %141 = vmatpush1.bf16.msra.mxu0 0
    %142 = vmatprep.subr.bf16.mxu0 0
    %143 = vmatpush1.bf16.msra.mxu0 0
    %144 = vmatprep.subr.bf16.mxu0 0
    %145 = vmatpush1.bf16.msra.mxu0 0
    %146 = vmatprep.subr.bf16.mxu0 0
    %147 = vmatpush1.bf16.msra.mxu0 0
    %148 = vmatprep.subr.bf16.mxu0 0
    %149 = vmatpush1.bf16.msra.mxu0 %v136
    %150 = vmatprep.subr.bf16.mxu0 0
    %151 = vmatpush1.bf16.msra.mxu0 %v124
    %152 = vmatprep.subr.bf16.mxu0 0
    %153 = vmatpush1.bf16.msra.mxu0 %v123
    %154 = vmatprep.subr.bf16.mxu0 0
    %155 = vmatpush2.bf16.msra.mxu0 0
    %156 = vmatprep.subr.bf16.mxu0 0
    %157 = vmatpush2.bf16.msra.mxu0 0
    %158 = vmatprep.subr.bf16.mxu0 0
    %159 = vmatpush2.bf16.msra.mxu0 0
    %160 = vmatprep.subr.bf16.mxu0 0
    %161 = vmatpush2.bf16.msra.mxu0 0
    %162 = vmatprep.subr.bf16.mxu0 0
    %163 = vmatpush2.bf16.msra.mxu0 0
    %164 = vmatprep.subr.bf16.mxu0 0
    %165 = vmatpush2.bf16.msra.mxu0 0
    %166 = vmatprep.subr.bf16.mxu0 0
    %167 = vmatpush2.bf16.msra.mxu0 0
    %168 = vmatprep.subr.bf16.mxu0 0
    %169 = vmatpush2.bf16.msra.mxu0 0
    %170 = vmatprep.mubr.bf16.mxu0 0
    %171 = vmatmul.mubr.bf16.gmra.mxu0 %v130
    %v172 = vpop.f32.mrf.mxu0
    %v173 = vadd.f32 %v111, %v172
    %v174 = vpop.f32.mrf.mxu0
    %v175 = vpop.f32.mrf.mxu0
    %v176 = vpop.f32.mrf.mxu0
    %177 = vdwg.mxu0
    %v178 = vmax.f32 %v173, 0.0
    %v179 = vpack.c.bf16 %v178, %v178
    %v180 = vld [vmem:[#allocation7] sm:$0xf]
    %v181 = vld [vmem:[#allocation7 + $0x4] sm:$0xf]
    %v182 = vld [vmem:[#allocation7 + $0x8] sm:$0xf]
    %v183 = vld [vmem:[#allocation7 + $0xc] sm:$0xf]
    %v184 = vld [vmem:[#allocation7 + $0x10] sm:$0xf]
    %v185 = vld [vmem:[#allocation7 + $0x14] sm:$0xf]
    %v186 = vld [vmem:[#allocation7 + $0x18] sm:$0xf]
    %v187 = vld [vmem:[#allocation7 + $0x1c] sm:$0xf]
    %v188 = vld [vmem:[%s4] sm:$0x1]
    %v190 = vlaneseq
    %v191 = vshrl.u32 %v190, 7
    %v192 = vsub.s32 0, %v191
    %v193 = vrot.slane %v188, %v192
    %v203 = vunpack.c.l.b16 %v180
    %v204 = vunpack.c.l.b16 %v181
    %v205 = vunpack.c.l.b16 %v182
    %v206 = vunpack.c.l.b16 %v183
    %v207 = vunpack.c.l.b16 %v184
    %v208 = vunpack.c.l.b16 %v185
    %v209 = vunpack.c.l.b16 %v186
    %v210 = vunpack.c.l.b16 %v187
    %v211 = vpack.c.b16 %v204, %v203
    %v212 = vpack.c.b16 %v206, %v205
    %v213 = vpack.c.b16 %v208, %v207
    %v214 = vpack.c.b16 %v210, %v209
    %vm219 = vcmask 523264
    %v221 = vsel %vm219, %v179, 0
    %223 = vmatprep.subr.bf16.mxu0 0
    %224 = vmatpush1.bf16.msra.mxu0 0
    %225 = vmatprep.subr.bf16.mxu0 0
    %226 = vmatpush1.bf16.msra.mxu0 0
    %227 = vmatprep.subr.bf16.mxu0 0
    %228 = vmatpush1.bf16.msra.mxu0 0
    %229 = vmatprep.subr.bf16.mxu0 0
    %230 = vmatpush1.bf16.msra.mxu0 0
    %231 = vmatprep.subr.bf16.mxu0 0
    %232 = vmatpush1.bf16.msra.mxu0 %v214
    %233 = vmatprep.subr.bf16.mxu0 0
    %234 = vmatpush1.bf16.msra.mxu0 %v213
    %235 = vmatprep.subr.bf16.mxu0 0
    %236 = vmatpush1.bf16.msra.mxu0 %v212
    %237 = vmatprep.subr.bf16.mxu0 0
    %238 = vmatpush1.bf16.msra.mxu0 %v211
    %239 = vmatprep.subr.bf16.mxu0 0
    %240 = vmatpush2.bf16.msra.mxu0 0
    %241 = vmatprep.subr.bf16.mxu0 0
    %242 = vmatpush2.bf16.msra.mxu0 0
    %243 = vmatprep.subr.bf16.mxu0 0
    %244 = vmatpush2.bf16.msra.mxu0 0
    %245 = vmatprep.subr.bf16.mxu0 0
    %246 = vmatpush2.bf16.msra.mxu0 0
    %247 = vmatprep.subr.bf16.mxu0 0
    %248 = vmatpush2.bf16.msra.mxu0 0
    %249 = vmatprep.subr.bf16.mxu0 0
    %250 = vmatpush2.bf16.msra.mxu0 0
    %251 = vmatprep.subr.bf16.mxu0 0
    %252 = vmatpush2.bf16.msra.mxu0 0
    %253 = vmatprep.subr.bf16.mxu0 0
    %254 = vmatpush2.bf16.msra.mxu0 0
    %255 = vmatprep.mubr.bf16.mxu0 0
    %256 = vmatmul.mubr.bf16.gmra.mxu0 %v221
    %v257 = vpop.f32.mrf.mxu0
    %v258 = vadd.f32 %v193, %v257
    %v259 = vpop.f32.mrf.mxu0
    %v260 = vpop.f32.mrf.mxu0
    %v261 = vpop.f32.mrf.mxu0
    %262 = vdwg.mxu0
    %v263 = vmax.f32 %v258, 0.0
    %v264 = vpack.c.bf16 %v263, %v263
    %v265 = vld [vmem:[#allocation8] sm:$0xf]
    %v266 = vld [vmem:[#allocation8 + $0x4] sm:$0xf]
    %v267 = vld [vmem:[#allocation8 + $0x8] sm:$0xf]
    %v268 = vld [vmem:[#allocation8 + $0xc] sm:$0xf]
    %v269 = vld [vmem:[#allocation8 + $0x10] sm:$0xf]
    %v270 = vld [vmem:[#allocation8 + $0x14] sm:$0xf]
    %v271 = vld [vmem:[#allocation8 + $0x18] sm:$0xf]
    %v272 = vld [vmem:[#allocation8 + $0x1c] sm:$0xf]
    %v273 = vld [vmem:[%s6] sm:$0x1]
    %v275 = vlaneseq
    %v276 = vshrl.u32 %v275, 7
    %v277 = vsub.s32 0, %v276
    %v278 = vrot.slane %v273, %v277
    %v288 = vunpack.c.l.b16 %v265
    %v289 = vunpack.c.l.b16 %v266
    %v290 = vunpack.c.l.b16 %v267
    %v291 = vunpack.c.l.b16 %v268
    %v292 = vunpack.c.l.b16 %v269
    %v293 = vunpack.c.l.b16 %v270
    %v294 = vunpack.c.l.b16 %v271
    %v295 = vunpack.c.l.b16 %v272
    %v296 = vpack.c.b16 %v289, %v288
    %v297 = vpack.c.b16 %v291, %v290
    %v298 = vpack.c.b16 %v293, %v292
    %v299 = vpack.c.b16 %v295, %v294
    %v305 = vsel %vm219, %v264, 0
    %307 = vmatprep.subr.bf16.mxu0 0
    %308 = vmatpush1.bf16.msra.mxu0 0
    %309 = vmatprep.subr.bf16.mxu0 0
    %310 = vmatpush1.bf16.msra.mxu0 0
    %311 = vmatprep.subr.bf16.mxu0 0
    %312 = vmatpush1.bf16.msra.mxu0 0
    %313 = vmatprep.subr.bf16.mxu0 0
    %314 = vmatpush1.bf16.msra.mxu0 0
    %315 = vmatprep.subr.bf16.mxu0 0
    %316 = vmatpush1.bf16.msra.mxu0 %v299
    %317 = vmatprep.subr.bf16.mxu0 0
    %318 = vmatpush1.bf16.msra.mxu0 %v298
    %319 = vmatprep.subr.bf16.mxu0 0
    %320 = vmatpush1.bf16.msra.mxu0 %v297
    %321 = vmatprep.subr.bf16.mxu0 0
    %322 = vmatpush1.bf16.msra.mxu0 %v296
    %323 = vmatprep.subr.bf16.mxu0 0
    %324 = vmatpush2.bf16.msra.mxu0 0
    %325 = vmatprep.subr.bf16.mxu0 0
    %326 = vmatpush2.bf16.msra.mxu0 0
    %327 = vmatprep.subr.bf16.mxu0 0
    %328 = vmatpush2.bf16.msra.mxu0 0
    %329 = vmatprep.subr.bf16.mxu0 0
    %330 = vmatpush2.bf16.msra.mxu0 0
    %331 = vmatprep.subr.bf16.mxu0 0
    %332 = vmatpush2.bf16.msra.mxu0 0
    %333 = vmatprep.subr.bf16.mxu0 0
    %334 = vmatpush2.bf16.msra.mxu0 0
    %335 = vmatprep.subr.bf16.mxu0 0
    %336 = vmatpush2.bf16.msra.mxu0 0
    %337 = vmatprep.subr.bf16.mxu0 0
    %338 = vmatpush2.bf16.msra.mxu0 0
    %339 = vmatprep.mubr.bf16.mxu0 0
    %340 = vmatmul.mubr.bf16.gmra.mxu0 %v305
    %v341 = vpop.f32.mrf.mxu0
    %v342 = vadd.f32 %v278, %v341
    %v343 = vpop.f32.mrf.mxu0
    %v344 = vpop.f32.mrf.mxu0
    %v345 = vpop.f32.mrf.mxu0
    %346 = vdwg.mxu0
    %v347 = vmax.f32 %v342, 0.0
    %v348 = vpack.c.bf16 %v347, %v347
    %v349 = vld [vmem:[#allocation10] sm:$0xf]
    %v350 = vld [vmem:[#allocation10 + $0x4] sm:$0xf]
    %v351 = vld [vmem:[#allocation10 + $0x8] sm:$0xf]
    %v352 = vld [vmem:[#allocation10 + $0xc] sm:$0xf]
    %v353 = vld [vmem:[#allocation10 + $0x10] sm:$0xf]
    %v354 = vld [vmem:[#allocation10 + $0x14] sm:$0xf]
    %v355 = vld [vmem:[#allocation10 + $0x18] sm:$0xf]
    %v356 = vld [vmem:[#allocation10 + $0x1c] sm:$0xf]
    %v357 = vld [vmem:[%s8] sm:$0x1]
    %v359 = vlaneseq
    %v360 = vshrl.u32 %v359, 7
    %v361 = vsub.s32 0, %v360
    %v362 = vrot.slane %v357, %v361
    %v372 = vunpack.c.l.b16 %v349
    %v373 = vunpack.c.l.b16 %v350
    %v374 = vunpack.c.l.b16 %v351
    %v375 = vunpack.c.l.b16 %v352
    %v376 = vunpack.c.l.b16 %v353
    %v377 = vunpack.c.l.b16 %v354
    %v378 = vunpack.c.l.b16 %v355
    %v379 = vunpack.c.l.b16 %v356
    %v380 = vpack.c.b16 %v373, %v372
    %v381 = vpack.c.b16 %v375, %v374
    %v382 = vpack.c.b16 %v377, %v376
    %v383 = vpack.c.b16 %v379, %v378
    %v389 = vsel %vm219, %v348, 0
    %391 = vmatprep.subr.bf16.mxu0 0
    %392 = vmatpush1.bf16.msra.mxu0 0
    %393 = vmatprep.subr.bf16.mxu0 0
    %394 = vmatpush1.bf16.msra.mxu0 0
    %395 = vmatprep.subr.bf16.mxu0 0
    %396 = vmatpush1.bf16.msra.mxu0 0
    %397 = vmatprep.subr.bf16.mxu0 0
    %398 = vmatpush1.bf16.msra.mxu0 0
    %399 = vmatprep.subr.bf16.mxu0 0
    %400 = vmatpush1.bf16.msra.mxu0 %v383
    %401 = vmatprep.subr.bf16.mxu0 0
    %402 = vmatpush1.bf16.msra.mxu0 %v382
    %403 = vmatprep.subr.bf16.mxu0 0
    %404 = vmatpush1.bf16.msra.mxu0 %v381
    %405 = vmatprep.subr.bf16.mxu0 0
    %406 = vmatpush1.bf16.msra.mxu0 %v380
    %407 = vmatprep.subr.bf16.mxu0 0
    %408 = vmatpush2.bf16.msra.mxu0 0
    %409 = vmatprep.subr.bf16.mxu0 0
    %410 = vmatpush2.bf16.msra.mxu0 0
    %411 = vmatprep.subr.bf16.mxu0 0
    %412 = vmatpush2.bf16.msra.mxu0 0
    %413 = vmatprep.subr.bf16.mxu0 0
    %414 = vmatpush2.bf16.msra.mxu0 0
    %415 = vmatprep.subr.bf16.mxu0 0
    %416 = vmatpush2.bf16.msra.mxu0 0
    %417 = vmatprep.subr.bf16.mxu0 0
    %418 = vmatpush2.bf16.msra.mxu0 0
    %419 = vmatprep.subr.bf16.mxu0 0
    %420 = vmatpush2.bf16.msra.mxu0 0
    %421 = vmatprep.subr.bf16.mxu0 0
    %422 = vmatpush2.bf16.msra.mxu0 0
    %423 = vmatprep.mubr.bf16.mxu0 0
    %424 = vmatmul.mubr.bf16.gmra.mxu0 %v389
    %v425 = vpop.f32.mrf.mxu0
    %v426 = vadd.f32 %v362, %v425
    %v427 = vpop.f32.mrf.mxu0
    %v428 = vpop.f32.mrf.mxu0
    %v429 = vpop.f32.mrf.mxu0
    %430 = vdwg.mxu0
    %431 = vst [vmem:[#allocation11] sm:$0xff] %v426
    // Predicated region
    $region58: #{tpu_custom_call.1} parent=1 // pred_check
      _
    $region59: #{tpu_custom_call.1} parent=1 // pred_check_branch
      %433 = sbr.rel (0) target = $region61
    $region60: #{tpu_custom_call.1} parent=1 // pred_region
      %s435 = ssub.s32 128, 128
      %436 = vsyncadd [#allocation4], %s435
      %s438 = sshll.u32 [#allocation11], 4
      %s439 = int_to_ptr.vmem [resolvable:$true] %s438
      %441 = dma.vmem_to_hbm [thread:$0]  %s439, 128, %s9, [#allocation4]
    $region61: #{tpu_custom_call.1} parent=1 // pred_fallthru
      _
    // Predicated region
    $region62: #{tpu_custom_call.1} parent=1 // pred_check
      _
    $region63: #{tpu_custom_call.1} parent=1 // pred_check_branch
      %443 = sbr.rel (0) target = $region65
    $region64: #{tpu_custom_call.1} parent=1 // pred_region
      %444 = dma.done [#allocation4], 128
    $region65: #{tpu_custom_call.1} parent=1 // pred_fallthru
      _
    %445 = vsyncpa [#allocation3], 1
    %446 = vsyncpa [#allocation6], 1
    %447 = vsyncpa [#allocation9], 1
    %448 = vsyncpa [#allocation4], 1

</llo_original>
